<compile_context>
chip_gen: v7x
topology: tpu7x:2x2x1
jax: 0.10.0
libtpu: 0.0.40
codegen_flags: <defaults>
</compile_context>

<pallas_src>
import functools
from typing import Dict

import jax
import jax.numpy as jnp
from jax.experimental import pallas as pl
from jax.experimental.pallas import tpu as pltpu

_LANE = 128


def _largest_divisor_leq(n: int, cap: int) -> int:
    """Largest divisor of n that is <= cap (>= 1)."""
    cap = max(1, min(n, cap))
    for d in range(cap, 0, -1):
        if n % d == 0:
            return d
    return 1


def _vmem_config():
    """(target output-block bytes, vmem_limit_bytes), generation-aware."""
    try:
        cap = getattr(pltpu.get_tpu_info(), "vmem_capacity_bytes", None)
    except Exception:
        cap = None
    if cap is not None and cap >= 96 * 1024 * 1024:
        # v5e / v6e: 128 MiB physical VMEM -> bigger blocks, raised scope.
        return 16 * 1024 * 1024, 64 * 1024 * 1024
    # v7x (64 MiB physical, 32 MiB default scope) or unknown: stay <= 32 MiB.
    return 8 * 1024 * 1024, 32 * 1024 * 1024


def _one_hot_kernel(labels_ref, out_ref, *, n_class_blocks: int):
    # labels_ref: (b_blk, 1, n_tile) int32
    # out_ref:    (b_blk, c_blk, n_tile) out dtype
    c_blk = out_ref.shape[1]
    # Tiny (1, c_blk, 1) iota; the compare broadcasts it over batch and lanes,
    # so no full-block int32 class map is ever materialized.
    cls = jax.lax.broadcasted_iota(jnp.int32, (1, c_blk, 1), 1)
    if n_class_blocks > 1:
        cls = cls + pl.program_id(2) * c_blk
    one = jnp.ones((), dtype=out_ref.dtype)
    zero = jnp.zeros((), dtype=out_ref.dtype)
    # (b_blk,1,n_tile) == (1,c_blk,1): broadcast compare feeding a select,
    # built directly in the output dtype (no bool materialization + convert).
    out_ref[...] = jnp.where(labels_ref[...] == cls, one, zero)


def one_hot_semantic_pallas(labels: jax.Array, n_semantic: int,
                            dtype=jnp.float32) -> jax.Array:
    """labels: (B, H, W) integer label map -> (B, n_semantic, H, W) `dtype`.

    The kernel is output-writeback bound: prefer dtype=jnp.bfloat16 (2x) or
    jnp.int8 (4x) when the consumer tolerates it; 0/1 are exact in all dtypes.
    """
    labels = labels.astype(jnp.int32)
    B, H, W = labels.shape
    C = int(n_semantic)
    N = H * W
    item = jnp.dtype(dtype).itemsize

    target_block_bytes, vmem_limit = _vmem_config()
    budget_elems = max(_LANE, target_block_bytes // item)

    n_lane_blocks = pl.cdiv(N, _LANE)
    n_pad = n_lane_blocks * _LANE

    # --- class block ---------------------------------------------------------
    sub_mult = max(8, 32 // item)  # sublane packing multiple for this dtype
    if C * _LANE <= budget_elems:
        c_blk = C            # whole class axis per grid step (common case)
        c_pad = C
    else:
        # Rare huge-C fallback: pad the class dim so every class block is full
        # (the last block never indexes past C); post-call slice copies once.
        c_blk = max(sub_mult, ((budget_elems // _LANE) // sub_mult) * sub_mult)
        c_pad = pl.cdiv(C, c_blk) * c_blk

    # --- spatial tile: an exact divisor of the 128-aligned spatial size -------
    max_k = max(1, budget_elems // (c_blk * _LANE))
    k = _largest_divisor_leq(n_lane_blocks, max_k)
    if k < max(1, max_k // 8) and k < n_lane_blocks:
        # No usable divisor (e.g. prime lane-block count): accept extra spatial
        # padding (and the output slice) rather than tiny per-step blocks.
        k = min(max_k, n_lane_blocks)
        n_lane_blocks = pl.cdiv(n_lane_blocks, k) * k
        n_pad = n_lane_blocks * _LANE
    n_tile = k * _LANE
    spatial_tiles = n_lane_blocks // k

    # --- batch block: amortize per-step overhead when images are small --------
    b_blk = 1
    if c_blk == C:
        max_b = max(1, budget_elems // (c_blk * n_tile))
        b_blk = _largest_divisor_leq(B, max_b)

    # --- v7x: keep both TensorCores busy (>= 2 "parallel" grid points) --------
    if (B // b_blk) * spatial_tiles < 2:
        if b_blk > 1:
            b_blk = _largest_divisor_leq(B, b_blk // 2)
        elif n_lane_blocks >= 2:
            k = _largest_divisor_leq(n_lane_blocks, n_lane_blocks // 2)
            n_tile = k * _LANE
            spatial_tiles = n_lane_blocks // k

    flat = labels.reshape(B, 1, N)
    if n_pad != N:
        # Pad with -1 so padded lanes never match a valid class id.
        flat = jnp.pad(flat, ((0, 0), (0, 0), (0, n_pad - N)), constant_values=-1)

    grid = (B // b_blk, spatial_tiles, c_pad // c_blk)

    in_spec = pl.BlockSpec(
        (b_blk, 1, n_tile),
        lambda b, s, c: (b, 0, s),  # independent of c -> labels stay resident
    )
    out_spec = pl.BlockSpec(
        (b_blk, c_blk, n_tile),
        lambda b, s, c: (b, c, s),
    )

    out_flat = pl.pallas_call(
        functools.partial(_one_hot_kernel, n_class_blocks=grid[2]),
        out_shape=jax.ShapeDtypeStruct((B, c_pad, n_pad), dtype),
        grid_spec=pltpu.PrefetchScalarGridSpec(
            num_scalar_prefetch=0,
            grid=grid,
            in_specs=[in_spec],
            out_specs=out_spec,
        ),
        compiler_params=pltpu.CompilerParams(
            dimension_semantics=("parallel", "parallel", "arbitrary"),
            vmem_limit_bytes=vmem_limit,
        ),
        cost_estimate=pl.CostEstimate(
            flops=0,
            transcendentals=0,
            bytes_accessed=B * n_pad * 4 + B * c_pad * n_pad * item,
        ),
    )(flat)

    if c_pad != C:
        out_flat = out_flat[:, :C, :]
    if n_pad != N:
        out_flat = out_flat[:, :, :N]
    return out_flat.reshape(B, C, H, W)


class OneHotSemanticLabel:
    """JAX/Pallas port of the PyTorch transform (operates on a dict container).

    dtype defaults to float32 to match the PyTorch transform; pass
    dtype=jnp.bfloat16 (or jnp.int8) for a ~2x (~4x) faster, numerically exact
    one-hot when downstream code accepts it.
    """

    def __init__(self, n_semantic: int, dtype=jnp.float32) -> None:
        self.n_semantic = n_semantic
        self.dtype = dtype

    def __call__(self, container: Dict[str, jax.Array]) -> Dict[str, jax.Array]:
        out = dict(container)
        out["semantic"] = one_hot_semantic_pallas(
            container["semantic"], self.n_semantic, dtype=self.dtype)
        return out


if __name__ == "__main__":
    key = jax.random.PRNGKey(0)

    # --- primary check: lane-aligned spatial size, float32 ------------------
    B, H, W = 2, 16, 16
    n_semantic = 8
    labels = jax.random.randint(key, (B, H, W), 0, n_semantic, dtype=jnp.int32)

    transform = OneHotSemanticLabel(n_semantic)
    result = transform({"semantic": labels})
    one_hot = jax.block_until_ready(result["semantic"])

    ref = jax.nn.one_hot(labels, n_semantic, dtype=jnp.float32)  # (B, H, W, C)
    ref = jnp.transpose(ref, (0, 3, 1, 2))                       # (B, C, H, W)
    assert one_hot.shape == (B, n_semantic, H, W)
    assert one_hot.dtype == jnp.float32
    assert jnp.array_equal(one_hot, ref)

    # --- secondary check: non-multiple-of-128 spatial size (padding path) ---
    B2, H2, W2 = 2, 10, 10
    n_sem2 = 19
    labels2 = jax.random.randint(jax.random.PRNGKey(1), (B2, H2, W2), 0, n_sem2,
                                 dtype=jnp.int32)
    one_hot2 = jax.block_until_ready(one_hot_semantic_pallas(labels2, n_sem2))
    ref2 = jnp.transpose(jax.nn.one_hot(labels2, n_sem2, dtype=jnp.float32),
                         (0, 3, 1, 2))
    assert one_hot2.shape == (B2, n_sem2, H2, W2)
    assert jnp.array_equal(one_hot2, ref2)

    # --- recommended fast path: bfloat16 output (exact 0/1, half the bytes) --
    one_hot_bf16 = jax.block_until_ready(
        one_hot_semantic_pallas(labels, n_semantic, dtype=jnp.bfloat16))
    assert one_hot_bf16.dtype == jnp.bfloat16
    assert jnp.array_equal(one_hot_bf16.astype(jnp.float32), ref)

    print("KERNEL_OK")
</pallas_src>

<mosaic_0001>
module attributes {stable_mosaic.version = 11 : i64} {
  func.func @_one_hot_kernel(%arg0: i32, %arg1: i32, %arg2: i32, %arg3: memref<1x1x256xi32, #tpu.memory_space<vmem>>, %arg4: memref<1x8x256xf32, #tpu.memory_space<vmem>>) attributes {dimension_semantics = [#tpu.dimension_semantics<parallel>, #tpu.dimension_semantics<parallel>, #tpu.dimension_semantics<arbitrary>], iteration_bounds = array<i64: 2, 1, 1>, scalar_prefetch = 0 : i64, scratch_operands = 0 : i64, tpu.core_type = #tpu.core_type<tc>, window_params = [{transform_indices = @transform_0, window_bounds = array<i64: 1, 1, 256>}, {transform_indices = @transform_1, window_bounds = array<i64: 1, 8, 256>}]} {
    %0 = tpu.iota {dimensions = array<i32: 1>} : vector<1x8x1xi32>
    %c0 = arith.constant 0 : index
    %c0_0 = arith.constant 0 : index
    %c0_1 = arith.constant 0 : index
    %1 = vector.load %arg3[%c0, %c0_0, %c0_1] : memref<1x1x256xi32, #tpu.memory_space<vmem>>, vector<1x1x256xi32>
    %2 = vector.broadcast %1 : vector<1x1x256xi32> to vector<1x8x256xi32>
    %3 = vector.broadcast %0 : vector<1x8x1xi32> to vector<1x8x256xi32>
    %4 = arith.cmpi eq, %2, %3 : vector<1x8x256xi32>
    %cst = arith.constant 1.000000e+00 : f32
    %cst_2 = arith.constant 0.000000e+00 : f32
    %5 = vector.broadcast %cst : f32 to vector<1x8x256xf32>
    %6 = vector.broadcast %cst_2 : f32 to vector<1x8x256xf32>
    %7 = arith.select %4, %5, %6 : vector<1x8x256xi1>, vector<1x8x256xf32>
    %c0_3 = arith.constant 0 : index
    %c0_4 = arith.constant 0 : index
    %c0_5 = arith.constant 0 : index
    %8 = vector.load %arg4[%c0_3, %c0_4, %c0_5] : memref<1x8x256xf32, #tpu.memory_space<vmem>>, vector<1x8x256xf32>
    tpu.vector_store %arg4[%c0_3, %c0_4, %c0_5], %7 {strides = array<i32>} : memref<1x8x256xf32, #tpu.memory_space<vmem>>, vector<1x8x256xf32>,
    return
  }
  func.func @transform_0(%arg0: i32, %arg1: i32, %arg2: i32) -> (i32, i32, i32) {
    %c0_i32 = arith.constant 0 : i32
    %c0_i32_0 = arith.constant 0 : i32
    return %arg0, %c0_i32, %arg1 : i32, i32, i32
  }
  func.func @transform_1(%arg0: i32, %arg1: i32, %arg2: i32) -> (i32, i32, i32) {
    %c0_i32 = arith.constant 0 : i32
    return %arg0, %arg2, %arg1 : i32, i32, i32
  }
}

</mosaic_0001>

<llo_original>
// kernel: tpu_custom_call.1
$region0: #{tpu_custom_call.1}
  #allocation0 [shape = 'u32[]', space=smem, size = 0x4, offset = 0x4, fixed_abs, tag = 'smem constant byte address 0x4 - core index']
  #allocation1 [shape = 'u32[144,128]{1,0:T(1,128)}', space=vmem, size = 0x12000, scoped, tag = 'internal scratch']
  %s0 = inlined_call_operand.hbm [shape: s32[2,1,256], index: 0, kind: input, shape index: {}]
  %s1 = inlined_call_operand.hbm [shape: f32[2,8,256], index: 1, kind: output, shape index: {}]
  %s2 = sld [smem:[#allocation0]]
  $region41: #{tpu_custom_call.1} parent=0
    _
  %s4 = ssub.s32 1, %s2
  %s5 = scalar_select 0, %s4, %s2
  $region1: #{tpu_custom_call.1} parent=0
    #allocation2 [shape = 'u8[2048]{0}', space=vmem, size = 0x800, scoped, tag = 'input window, operand 0']
    #allocation3 [shape = 's32[2]{0}', space=sflag, size = 0x8, scoped, tag = 'scoped memory for tpu_custom_call.1']
    #allocation4 [shape = 's32[2]{0}', space=sflag, size = 0x8, scoped, tag = 'scoped memory for tpu_custom_call.1']
    #allocation5 [shape = 'u8[16384]{0}', space=vmem, size = 0x4000, scoped, tag = 'output window, operand 0']
    %6 = vsyncpa [#allocation3], 0
    %s7 = scalar_lea.sflag [#allocation3], 1
    %8 = vsyncpa %s7, 0
    %9 = vsyncpa [#allocation4], 0
    %s10 = scalar_lea.sflag [#allocation4], 1
    %11 = vsyncpa %s10, 0
    loop: start=0, step=1, limit=4
    $region2: #{tpu_custom_call.1} parent=1 // loop_pre_header
      _
    $region3: #{tpu_custom_call.1} parent=1 // loop_header
      %s13 = sphi 0, %s17
      %p14 = scmp.ge.s32.totalorder %s13, 4
      %s20 = sphi 0, %s39
      %s21 = sphi 0, %s35
      %s22 = sphi 0, %s31
      %s23 = sphi 0, %s20
      %s24 = sphi 0, %s21
      %s25 = sphi 0, %s22
      %s26 = sphi 0, %s23
      %s27 = sphi 0, %s24
      %s28 = sphi 0, %s25
      %s44 = sphi 0, %s46
      %s47 = sphi 0, %s44
      %s48 = sphi 0, %s47
      %s64 = sphi 0, %s48
      %s74 = sphi 0, %s76
      %s77 = sphi 0, %s74
      %s78 = sphi 0, %s77
      %s94 = sphi 0, %s78
    $region4: #{tpu_custom_call.1} parent=1 // loop_header_branch
      %16 = sbr.rel (%p14) target = $region8
    $region5: #{tpu_custom_call.1} parent=1 // loop_body
      %s18 = ssub.s32 %s13, 1
      %s19 = ssub.s32 %s13, 2
      %s29 = sadd.s32 1, %s22
      %p30 = scmp.ge.s32.totalorder %s29, 1
      %s31 = scalar_select %p30, 0, %s29
      %s32 = sadd.s32 1, %s21
      %s33 = scalar_select %p30, %s32, %s21
      %p34 = scmp.ge.s32.totalorder %s33, 1
      %s35 = scalar_select %p34, 0, %s33
      %s36 = sadd.s32 1, %s20
      %s37 = scalar_select %p34, %s36, %s20
      %p38 = scmp.ge.s32.totalorder %s37, 2
      %s39 = scalar_select %p38, 0, %s37
      %s40 = ssub.s32 %s20, %s39
      %s41 = ssub.s32 %s21, %s35
      %s42 = sor.u32 %s40, %s41
      %p43 = scmp.eq.s32.totalorder %s42, 0
      %s45 = sadd.s32 %s44, 1
      %s46 = scalar_select %p43, %s44, %s45
      %p49 = pneg %p43
      %p50 = scmp.eq.s32.totalorder %s13, 1
      %p51 = por %p49, %p50
      %p52 = scmp.ne.s32.totalorder %s44, %s47
      %p53 = scmp.eq.s32.totalorder %s13, 0
      %p54 = por %p52, %p53
      %p55 = scmp.ne.s32.totalorder %s44, %s47
      %p56 = scmp.eq.s32.totalorder %s18, 1
      %p57 = por %p55, %p56
      %p58 = scmp.ne.s32.totalorder %s47, %s48
      %p59 = scmp.eq.s32.totalorder %s18, 0
      %p60 = por %p58, %p59
      %p61 = scmp.ne.s32.totalorder %s47, %s48
      %p62 = scmp.eq.s32.totalorder %s19, 1
      %p63 = por %p61, %p62
      %p65 = scmp.ne.s32.totalorder %s48, %s64
      %p66 = scmp.eq.s32.totalorder %s19, 0
      %p67 = por %p65, %p66
      %s68 = ssub.s32 %s20, %s39
      %s69 = ssub.s32 %s22, %s31
      %s70 = sor.u32 %s68, %s69
      %s71 = ssub.s32 %s21, %s35
      %s72 = sor.u32 %s70, %s71
      %p73 = scmp.eq.s32.totalorder %s72, 0
      %s75 = sadd.s32 %s74, 1
      %s76 = scalar_select %p73, %s74, %s75
      %p79 = pneg %p73
      %p80 = scmp.eq.s32.totalorder %s13, 1
      %p81 = por %p79, %p80
      %p82 = scmp.ne.s32.totalorder %s74, %s77
      %p83 = scmp.eq.s32.totalorder %s13, 0
      %p84 = por %p82, %p83
      %p85 = scmp.ne.s32.totalorder %s74, %s77
      %p86 = scmp.eq.s32.totalorder %s18, 1
      %p87 = por %p85, %p86
      %p88 = scmp.ne.s32.totalorder %s77, %s78
      %p89 = scmp.eq.s32.totalorder %s18, 0
      %p90 = por %p88, %p89
      %p91 = scmp.ne.s32.totalorder %s77, %s78
      %p92 = scmp.eq.s32.totalorder %s19, 1
      %p93 = por %p91, %p92
      %p95 = scmp.ne.s32.totalorder %s78, %s94
      %p96 = scmp.eq.s32.totalorder %s19, 0
      %p97 = por %p95, %p96
      %p98 = scmp.le.s32.totalorder 1, %s13
      %p99 = scmp.lt.s32.totalorder %s13, 3
      %p100 = pnand %p98, %p99
      %p101 = pneg %p100
      // Predicated region
      $region9: #{tpu_custom_call.1} parent=5 // pred_check
        _
      $region10: #{tpu_custom_call.1} parent=5 // pred_check_branch
        %103 = sbr.rel (%p100) target = $region12
      $region11: #{tpu_custom_call.1} parent=5 // pred_region
        %s104 = ssub.s32 %s13, 1
      $region12: #{tpu_custom_call.1} parent=5 // pred_fallthru
        _
      %p105 = scmp.lt.s32.totalorder %s13, 2
      // Predicated region
      $region13: #{tpu_custom_call.1} parent=5 // pred_check
        %p106 = pneg %p105
      $region14: #{tpu_custom_call.1} parent=5 // pred_check_branch
        %108 = sbr.rel (%p106) target = $region16
      $region15: #{tpu_custom_call.1} parent=5 // pred_region
        // Predicated region
        $region17: #{tpu_custom_call.1} parent=15 // pred_check
          %p109 = pneg %p54
        $region18: #{tpu_custom_call.1} parent=15 // pred_check_branch
          %111 = sbr.rel (%p109) target = $region20
        $region19: #{tpu_custom_call.1} parent=15 // pred_region
          %s112 = sand.u32 %s44, 1
          %s113 = scalar_lea.sflag [#allocation3], %s112
          %s114 = sand.u32 %s44, 1
          %s115 = smul.addr %s114, 2
          %s116 = scalar_lea.vmem [#allocation2], %s115
          %s117 = smul.u32 2, %s21
          %s119 = ssub.s32 32, 32
          %120 = vsyncadd %s113, %s119
          %s121 = smul.addr %s20, 2
          %s122 = sadd.s32 %s117, %s121
          %s123 = smul.addr %s122, 16
          %s124 = scalar_lea.hbm %s0, %s123
          %s126 = sshll.u32 %s116, 4
          %s127 = int_to_ptr.vmem [resolvable:$true] %s126
          %129 = dma.hbm_to_vmem [thread:$0]  %s124, 32, %s127, %s113
        $region20: #{tpu_custom_call.1} parent=15 // pred_fallthru
          _
      $region16: #{tpu_custom_call.1} parent=5 // pred_fallthru
        _
      %p130 = scmp.le.s32.totalorder 1, %s13
      %p131 = scmp.lt.s32.totalorder %s13, 3
      %p132 = pnand %p130, %p131
      %p133 = pneg %p132
      // Predicated region
      $region21: #{tpu_custom_call.1} parent=5 // pred_check
        _
      $region22: #{tpu_custom_call.1} parent=5 // pred_check_branch
        %135 = sbr.rel (%p132) target = $region24
      $region23: #{tpu_custom_call.1} parent=5 // pred_region
        %s136 = ssub.s32 %s13, 1
        %s137 = sand.u32 %s47, 1
        %s138 = scalar_lea.sflag [#allocation3], %s137
        %s139 = sand.u32 %s47, 1
        %s140 = smul.addr %s139, 2
        %s141 = scalar_lea.vmem [#allocation2], %s140
        // Predicated region
        $region25: #{tpu_custom_call.1} parent=23 // pred_check
          %p142 = pneg %p60
        $region26: #{tpu_custom_call.1} parent=23 // pred_check_branch
          %144 = sbr.rel (%p142) target = $region28
        $region27: #{tpu_custom_call.1} parent=23 // pred_region
          %145 = dma.done %s138, 32
        $region28: #{tpu_custom_call.1} parent=23 // pred_fallthru
          _
        %s146 = sand.u32 %s47, 1
        %s147 = scalar_lea.sflag [#allocation3], %s146
        %s148 = sand.u32 %s47, 1
        %s149 = smul.addr %s148, 2
        %s150 = scalar_lea.vmem [#allocation2], %s149
        %p151 = pneg %p60
        %p152 = pneg %p57
        %p153 = pneg %p90
        %p154 = pneg %p87
        %s155 = sand.u32 %s77, 1
        %s156 = scalar_lea.sflag [#allocation4], %s155
        %s157 = sand.u32 %s77, 1
        %s158 = smul.addr %s157, 16
        %s159 = scalar_lea.vmem [#allocation5], %s158
        %s160 = smul.u32 2, %s24
        %s161 = smul.u32 2, %s24
        %v162 = vlaneseq
        %v163 = vshrl.u32 %v162, 7
        %v164 = vld [vmem:[%s141] sm:$0x3]
        %v165 = vlaneseq
        %v166 = vshrl.u32 %v165, 7
        %v167 = vsub.s32 0, %v166
        %v168 = vrot.slane %v164, %v167
        %v169 = vlaneseq
        %v170 = vshrl.u32 %v169, 7
        %v171 = vsub.s32 1, %v170
        %v172 = vrot.slane %v164, %v171
        %vm173 = vcmp.eq.s32.totalorder %v168, %v163
        %vm174 = vcmp.eq.s32.totalorder %v172, %v163
        %v175 = vsel %vm173, 1.0, 0.0
        %v176 = vsel %vm174, 1.0, 0.0
        %177 = vst [vmem:[%s159] sm:$0xff] %v175
        %178 = vst [vmem:[%s159 + $0x8] sm:$0xff] %v176
        %s179 = sand.u32 %s77, 1
        %s180 = scalar_lea.sflag [#allocation4], %s179
        %s181 = sand.u32 %s77, 1
        %s182 = smul.addr %s181, 16
        %s183 = scalar_lea.vmem [#allocation5], %s182
        // Predicated region
        $region29: #{tpu_custom_call.1} parent=23 // pred_check
          %p184 = pneg %p87
        $region30: #{tpu_custom_call.1} parent=23 // pred_check_branch
          %186 = sbr.rel (%p184) target = $region32
        $region31: #{tpu_custom_call.1} parent=23 // pred_region
          %s187 = smul.u32 2, %s24
          %s189 = ssub.s32 256, 256
          %190 = vsyncadd %s180, %s189
          %s191 = smul.addr %s25, 2
          %s192 = sadd.s32 %s187, %s191
          %s193 = smul.addr %s23, 2
          %s194 = sadd.s32 %s192, %s193
          %s195 = smul.addr %s194, 128
          %s196 = scalar_lea.hbm %s1, %s195
          %s198 = sshll.u32 %s183, 4
          %s199 = int_to_ptr.vmem [resolvable:$true] %s198
          %201 = dma.vmem_to_hbm [thread:$0]  %s199, 256, %s196, %s180
        $region32: #{tpu_custom_call.1} parent=23 // pred_fallthru
          _
      $region24: #{tpu_custom_call.1} parent=5 // pred_fallthru
        _
      %p202 = scmp.le.s32.totalorder 2, %s13
      // Predicated region
      $region33: #{tpu_custom_call.1} parent=5 // pred_check
        %p203 = pneg %p202
      $region34: #{tpu_custom_call.1} parent=5 // pred_check_branch
        %205 = sbr.rel (%p203) target = $region36
      $region35: #{tpu_custom_call.1} parent=5 // pred_region
        %s206 = ssub.s32 %s13, 2
        // Predicated region
        $region37: #{tpu_custom_call.1} parent=35 // pred_check
          %p207 = pneg %p93
        $region38: #{tpu_custom_call.1} parent=35 // pred_check_branch
          %209 = sbr.rel (%p207) target = $region40
        $region39: #{tpu_custom_call.1} parent=35 // pred_region
          %s210 = sand.u32 %s78, 1
          %s211 = scalar_lea.sflag [#allocation4], %s210
          %s212 = sand.u32 %s78, 1
          %s213 = smul.addr %s212, 16
          %s214 = scalar_lea.vmem [#allocation5], %s213
          %215 = dma.done %s211, 256
        $region40: #{tpu_custom_call.1} parent=35 // pred_fallthru
          _
      $region36: #{tpu_custom_call.1} parent=5 // pred_fallthru
        _
    $region6: #{tpu_custom_call.1} parent=1 // loop_footer
      %s17 = sadd.s32 1, %s13
    $region7: #{tpu_custom_call.1} parent=1 // loop_footer_branch
      %12 = sbr.rel target = $region3
    $region8: #{tpu_custom_call.1} parent=1 // loop_exit
      _
    %216 = vsyncpa [#allocation3], 1
    %s217 = scalar_lea.sflag [#allocation3], 1
    %218 = vsyncpa %s217, 1
    %219 = vsyncpa [#allocation4], 1
    %s220 = scalar_lea.sflag [#allocation4], 1
    %221 = vsyncpa %s220, 1

</llo_original>
